<compile_context>
chip_gen: v6e
topology: v6e:2x2x1
jax: 0.10.0
libtpu: 0.0.40
codegen_flags: <defaults>
</compile_context>

<pallas_src>
import math

import jax
import jax.numpy as jnp
from jax.experimental import pallas as pl
from jax.experimental.pallas import tpu as pltpu


def _vconv_matmul_kernel(w_ref, b_ref, p_ref, o_ref):
    # w_ref: VMEM (Cout, K)       flattened OIHW weights, K = Cin*KH*KW
    # b_ref: VMEM (Cout, 1)       bias column
    # p_ref: VMEM (1, K, H*W)     im2col patches for this batch element
    # o_ref: VMEM (1, Cout, H*W)  lane-dense output slab
    patches = p_ref[0, :, :]
    acc = jnp.dot(w_ref[...], patches, preferred_element_type=jnp.float32)
    acc = acc + b_ref[...]          # (Cout, 1) broadcast along lanes (VPU, free slack)
    o_ref[0, :, :] = acc.astype(o_ref.dtype)


def vertical_conv2d(x, weight, bias):
    """Pallas implementation of VerticalConv2d.forward (NCHW)."""
    B, Cin, H, W = x.shape
    Cout, _, kh, kw = weight.shape  # kh = real (already halved) kernel height

    # F.pad(input, (pad_left, pad_right, kh, -1)):
    #   width padded (kw//2, kw-1-kw//2); height: crop last row, pad kh zeros on top.
    pad_left = kw // 2
    pad_right = (kw - 1) - pad_left
    x_pad = jnp.pad(
        x[:, :, : H - 1, :],
        ((0, 0), (0, 0), (kh, 0), (pad_left, pad_right)),
    )

    # im2col: patches[b, c*KH*KW + dh*KW + dw, h*W + w] = x_pad[b, c, h+dh, w+dw]
    taps = []
    for dh in range(kh):
        for dw in range(kw):
            taps.append(x_pad[:, :, dh:dh + H, dw:dw + W])      # (B, Cin, H, W)
    K = Cin * kh * kw
    HW = H * W
    patches = jnp.stack(taps, axis=2).reshape(B, K, HW)

    w_mat = weight.reshape(Cout, K)    # matches c*KH*KW + dh*KW + dw ordering
    b_col = bias.reshape(Cout, 1)

    out = pl.pallas_call(
        _vconv_matmul_kernel,
        out_shape=jax.ShapeDtypeStruct((B, Cout, HW), x.dtype),
        grid=(B,),
        in_specs=[
            pl.BlockSpec((Cout, K), lambda b: (0, 0)),       # weights (VMEM, resident)
            pl.BlockSpec((Cout, 1), lambda b: (0, 0)),       # bias column (VMEM)
            pl.BlockSpec((1, K, HW), lambda b: (b, 0, 0)),   # im2col slab for batch b
        ],
        out_specs=pl.BlockSpec((1, Cout, HW), lambda b: (b, 0, 0)),
        compiler_params=pltpu.CompilerParams(
            dimension_semantics=("parallel",)
        ),
    )(w_mat, b_col, patches)
    return out.reshape(B, Cout, H, W)


def _reference(x, weight, bias):
    """Pure-JAX reference reproducing F.pad + F.conv2d semantics."""
    B, Cin, H, W = x.shape
    _, _, kh, kw = weight.shape
    pad_left = kw // 2
    pad_right = (kw - 1) - pad_left
    x_pad = jnp.pad(
        x[:, :, : H - 1, :],
        ((0, 0), (0, 0), (kh, 0), (pad_left, pad_right)),
    )
    y = jax.lax.conv_general_dilated(
        x_pad, weight, window_strides=(1, 1), padding="VALID",
        dimension_numbers=("NCHW", "OIHW", "NCHW"),
    )
    return y + bias[None, :, None, None]


if __name__ == "__main__":
    # Module config: in_channels=4, out_channels=8, kernel_size=(5,5),
    # groups=1, bias=True, capture_center=True
    B, Cin, Cout, H, W = 2, 4, 8, 16, 16
    kh_full, kw_full = 5, 5
    capture_center = True
    kh_real = kh_full // 2 if capture_center else kh_full // 2 + 1

    # Deterministic parameter init (Conv2d-style uniform bounds).
    fan_in = Cin * kh_real * kw_full
    bound = 1.0 / math.sqrt(fan_in)
    key = jax.random.PRNGKey(0)
    k_w, k_b, k_x = jax.random.split(key, 3)
    weight = jax.random.uniform(
        k_w, (Cout, Cin, kh_real, kw_full), jnp.float32, minval=-bound, maxval=bound
    )
    bias = jax.random.uniform(k_b, (Cout,), jnp.float32, minval=-bound, maxval=bound)
    x = jax.random.normal(k_x, (B, Cin, H, W), jnp.float32)

    out = vertical_conv2d(x, weight, bias)
    out = jax.block_until_ready(out)

    ref = jax.block_until_ready(_reference(x, weight, bias))
    assert out.shape == (B, Cout, H, W), out.shape
    assert jnp.allclose(out, ref, atol=1e-5, rtol=1e-5), float(
        jnp.max(jnp.abs(out - ref))
    )
    print("KERNEL_OK")
</pallas_src>

<mosaic_0001>
module attributes {stable_mosaic.version = 11 : i64} {
  func.func @_vconv_matmul_kernel(%arg0: i32, %arg1: memref<8x40xf32, #tpu.memory_space<vmem>>, %arg2: memref<8x1xf32, #tpu.memory_space<vmem>>, %arg3: memref<1x40x256xf32, #tpu.memory_space<vmem>>, %arg4: memref<1x8x256xf32, #tpu.memory_space<vmem>>) attributes {dimension_semantics = [#tpu.dimension_semantics<parallel>], iteration_bounds = array<i64: 2>, scalar_prefetch = 0 : i64, scratch_operands = 0 : i64, tpu.core_type = #tpu.core_type<tc>, window_params = [{pipeline_mode = #tpu.pipeline_mode<synchronous>, transform_indices = @transform_0, window_bounds = array<i64: 8, 40>}, {pipeline_mode = #tpu.pipeline_mode<synchronous>, transform_indices = @transform_1, window_bounds = array<i64: 8, 1>}, {transform_indices = @transform_2, window_bounds = array<i64: 1, 40, 256>}, {transform_indices = @transform_3, window_bounds = array<i64: 1, 8, 256>}]} {
    %c0 = arith.constant 0 : index
    %c0_0 = arith.constant 0 : index
    %c0_1 = arith.constant 0 : index
    %0 = vector.load %arg3[%c0, %c0_0, %c0_1] : memref<1x40x256xf32, #tpu.memory_space<vmem>>, vector<1x40x256xf32>
    %1 = vector.shape_cast %0 : vector<1x40x256xf32> to vector<40x256xf32>
    %c0_2 = arith.constant 0 : index
    %c0_3 = arith.constant 0 : index
    %2 = vector.load %arg1[%c0_2, %c0_3] : memref<8x40xf32, #tpu.memory_space<vmem>>, vector<8x40xf32>
    %cst = arith.constant dense<0.000000e+00> : vector<8x256xf32>
    %3 = tpu.matmul %2, %1, %cst {dimension_numbers = #tpu.dot_dimension_numbers<[1], [0], [0], [1], [0, 0, 1, 1], [], []>} : vector<8x40xf32>, vector<40x256xf32>, vector<8x256xf32> -> vector<8x256xf32>
    %c0_4 = arith.constant 0 : index
    %c0_5 = arith.constant 0 : index
    %4 = vector.load %arg2[%c0_4, %c0_5] : memref<8x1xf32, #tpu.memory_space<vmem>>, vector<8x1xf32>
    %5 = vector.broadcast %4 : vector<8x1xf32> to vector<8x256xf32>
    %6 = arith.addf %3, %5 : vector<8x256xf32>
    %c0_6 = arith.constant 0 : index
    %c0_7 = arith.constant 0 : index
    %c0_8 = arith.constant 0 : index
    %7 = vector.load %arg4[%c0_6, %c0_7, %c0_8] : memref<1x8x256xf32, #tpu.memory_space<vmem>>, vector<1x8x256xf32>
    %8 = vector.shape_cast %7 : vector<1x8x256xf32> to vector<8x256xf32>
    %9 = vector.shape_cast %6 : vector<8x256xf32> to vector<1x8x256xf32>
    tpu.vector_store %arg4[%c0_6, %c0_7, %c0_8], %9 {strides = array<i32>} : memref<1x8x256xf32, #tpu.memory_space<vmem>>, vector<1x8x256xf32>,
    return
  }
  func.func @transform_0(%arg0: i32) -> (i32, i32) {
    %c0_i32 = arith.constant 0 : i32
    %c0_i32_0 = arith.constant 0 : i32
    %c0_i32_1 = arith.constant 0 : i32
    return %c0_i32, %c0_i32_0 : i32, i32
  }
  func.func @transform_1(%arg0: i32) -> (i32, i32) {
    %c0_i32 = arith.constant 0 : i32
    %c0_i32_0 = arith.constant 0 : i32
    %c0_i32_1 = arith.constant 0 : i32
    return %c0_i32, %c0_i32_0 : i32, i32
  }
  func.func @transform_2(%arg0: i32) -> (i32, i32, i32) {
    %c0_i32 = arith.constant 0 : i32
    %c0_i32_0 = arith.constant 0 : i32
    %c0_i32_1 = arith.constant 0 : i32
    return %arg0, %c0_i32, %c0_i32_0 : i32, i32, i32
  }
  func.func @transform_3(%arg0: i32) -> (i32, i32, i32) {
    %c0_i32 = arith.constant 0 : i32
    %c0_i32_0 = arith.constant 0 : i32
    %c0_i32_1 = arith.constant 0 : i32
    return %arg0, %c0_i32, %c0_i32_0 : i32, i32, i32
  }
}

</mosaic_0001>

<llo_original>
// kernel: tpu_custom_call.1
$region0: #{tpu_custom_call.1}
  #allocation0 [shape = 'u32[]', space=smem, size = 0x4, offset = 0x4, fixed_abs, tag = 'smem constant byte address 0x4 - core index']
  #allocation1 [shape = 'u32[144,128]{1,0:T(1,128)}', space=vmem, size = 0x12000, scoped, tag = 'internal scratch']
  %s0 = inlined_call_operand.vmem [shape: f32[8,40], index: 0, kind: input, shape index: {}]
  %s1 = inlined_call_operand.vmem [shape: f32[8,1], index: 1, kind: input, shape index: {}]
  %s2 = inlined_call_operand.hbm [shape: f32[2,40,256], index: 2, kind: input, shape index: {}]
  %s3 = inlined_call_operand.hbm [shape: f32[2,8,256], index: 3, kind: output, shape index: {}]
  %s4 = sld [smem:[#allocation0]]
  $region49: #{tpu_custom_call.1} parent=0
    _
  %s6 = ssub.s32 1, %s4
  %s7 = scalar_select 0, %s6, %s4
  $region1: #{tpu_custom_call.1} parent=0
    #allocation2 [shape = 'u8[81920]{0}', space=vmem, size = 0x14000, scoped, tag = 'input window, operand 2']
    #allocation3 [shape = 's32[2]{0}', space=sflag, size = 0x8, scoped, tag = 'scoped memory for tpu_custom_call.1']
    #allocation4 [shape = 's32[2]{0}', space=sflag, size = 0x8, scoped, tag = 'scoped memory for tpu_custom_call.1']
    #allocation5 [shape = 'u8[16384]{0}', space=vmem, size = 0x4000, scoped, tag = 'output window, operand 0']
    %8 = vsyncpa [#allocation3], 0
    %s9 = scalar_lea.sflag [#allocation3], 1
    %10 = vsyncpa %s9, 0
    %11 = vsyncpa [#allocation4], 0
    %s12 = scalar_lea.sflag [#allocation4], 1
    %13 = vsyncpa %s12, 0
    loop: start=0, step=1, limit=4
    $region2: #{tpu_custom_call.1} parent=1 // loop_pre_header
      _
    $region3: #{tpu_custom_call.1} parent=1 // loop_header
      %s15 = sphi 0, %s19
      %p16 = scmp.ge.s32.totalorder %s15, 4
      %s23 = sphi 0, %s23
      %s25 = sphi 0, %s23
      %s26 = sphi 0, %s25
      %s40 = sphi 0, %s26
      %s44 = sphi 0, %s44
      %s46 = sphi 0, %s44
      %s47 = sphi 0, %s46
      %s61 = sphi 0, %s47
      %s67 = sphi 0, %s69
      %s70 = sphi 0, %s67
      %s71 = sphi 0, %s70
      %s87 = sphi 0, %s71
      %s93 = sphi 0, %s95
      %s96 = sphi 0, %s93
      %s97 = sphi 0, %s96
      %s113 = sphi 0, %s97
    $region4: #{tpu_custom_call.1} parent=1 // loop_header_branch
      %18 = sbr.rel (%p16) target = $region8
    $region5: #{tpu_custom_call.1} parent=1 // loop_body
      %s20 = ssub.s32 %s15, 1
      %s21 = ssub.s32 %s15, 2
      %s22 = sadd.s32 %s15, 1
      %s24 = sadd.s32 %s23, 1
      %p27 = scmp.eq.s32.totalorder %s15, 1
      %p28 = scmp.ne.s32.totalorder %s23, %s25
      %p29 = scmp.eq.s32.totalorder %s15, 0
      %p30 = por %p28, %p29
      %p31 = scmp.ne.s32.totalorder %s23, %s25
      %p32 = scmp.eq.s32.totalorder %s20, 1
      %p33 = por %p31, %p32
      %p34 = scmp.ne.s32.totalorder %s25, %s26
      %p35 = scmp.eq.s32.totalorder %s20, 0
      %p36 = por %p34, %p35
      %p37 = scmp.ne.s32.totalorder %s25, %s26
      %p38 = scmp.eq.s32.totalorder %s21, 1
      %p39 = por %p37, %p38
      %p41 = scmp.ne.s32.totalorder %s26, %s40
      %p42 = scmp.eq.s32.totalorder %s21, 0
      %p43 = por %p41, %p42
      %s45 = sadd.s32 %s44, 1
      %p48 = scmp.eq.s32.totalorder %s15, 1
      %p49 = scmp.ne.s32.totalorder %s44, %s46
      %p50 = scmp.eq.s32.totalorder %s15, 0
      %p51 = por %p49, %p50
      %p52 = scmp.ne.s32.totalorder %s44, %s46
      %p53 = scmp.eq.s32.totalorder %s20, 1
      %p54 = por %p52, %p53
      %p55 = scmp.ne.s32.totalorder %s46, %s47
      %p56 = scmp.eq.s32.totalorder %s20, 0
      %p57 = por %p55, %p56
      %p58 = scmp.ne.s32.totalorder %s46, %s47
      %p59 = scmp.eq.s32.totalorder %s21, 1
      %p60 = por %p58, %p59
      %p62 = scmp.ne.s32.totalorder %s47, %s61
      %p63 = scmp.eq.s32.totalorder %s21, 0
      %p64 = por %p62, %p63
      %s65 = ssub.s32 %s15, %s22
      %p66 = scmp.eq.s32.totalorder %s65, 0
      %s68 = sadd.s32 %s67, 1
      %s69 = scalar_select %p66, %s67, %s68
      %p72 = pneg %p66
      %p73 = scmp.eq.s32.totalorder %s15, 1
      %p74 = por %p72, %p73
      %p75 = scmp.ne.s32.totalorder %s67, %s70
      %p76 = scmp.eq.s32.totalorder %s15, 0
      %p77 = por %p75, %p76
      %p78 = scmp.ne.s32.totalorder %s67, %s70
      %p79 = scmp.eq.s32.totalorder %s20, 1
      %p80 = por %p78, %p79
      %p81 = scmp.ne.s32.totalorder %s70, %s71
      %p82 = scmp.eq.s32.totalorder %s20, 0
      %p83 = por %p81, %p82
      %p84 = scmp.ne.s32.totalorder %s70, %s71
      %p85 = scmp.eq.s32.totalorder %s21, 1
      %p86 = por %p84, %p85
      %p88 = scmp.ne.s32.totalorder %s71, %s87
      %p89 = scmp.eq.s32.totalorder %s21, 0
      %p90 = por %p88, %p89
      %s91 = ssub.s32 %s15, %s22
      %p92 = scmp.eq.s32.totalorder %s91, 0
      %s94 = sadd.s32 %s93, 1
      %s95 = scalar_select %p92, %s93, %s94
      %p98 = pneg %p92
      %p99 = scmp.eq.s32.totalorder %s15, 1
      %p100 = por %p98, %p99
      %p101 = scmp.ne.s32.totalorder %s93, %s96
      %p102 = scmp.eq.s32.totalorder %s15, 0
      %p103 = por %p101, %p102
      %p104 = scmp.ne.s32.totalorder %s93, %s96
      %p105 = scmp.eq.s32.totalorder %s20, 1
      %p106 = por %p104, %p105
      %p107 = scmp.ne.s32.totalorder %s96, %s97
      %p108 = scmp.eq.s32.totalorder %s20, 0
      %p109 = por %p107, %p108
      %p110 = scmp.ne.s32.totalorder %s96, %s97
      %p111 = scmp.eq.s32.totalorder %s21, 1
      %p112 = por %p110, %p111
      %p114 = scmp.ne.s32.totalorder %s97, %s113
      %p115 = scmp.eq.s32.totalorder %s21, 0
      %p116 = por %p114, %p115
      %p117 = scmp.le.s32.totalorder 1, %s15
      %p118 = scmp.lt.s32.totalorder %s15, 3
      %p119 = pnand %p117, %p118
      %p120 = pneg %p119
      // Predicated region
      $region9: #{tpu_custom_call.1} parent=5 // pred_check
        _
      $region10: #{tpu_custom_call.1} parent=5 // pred_check_branch
        %122 = sbr.rel (%p119) target = $region12
      $region11: #{tpu_custom_call.1} parent=5 // pred_region
        %s123 = ssub.s32 %s15, 1
        // Predicated region
        $region13: #{tpu_custom_call.1} parent=11 // pred_check
          %p124 = pneg %p36
        $region14: #{tpu_custom_call.1} parent=11 // pred_check_branch
          %126 = sbr.rel (%p124) target = $region16
        $region15: #{tpu_custom_call.1} parent=11 // pred_region
          _
        $region16: #{tpu_custom_call.1} parent=11 // pred_fallthru
          _
        // Predicated region
        $region17: #{tpu_custom_call.1} parent=11 // pred_check
          %p127 = pneg %p57
        $region18: #{tpu_custom_call.1} parent=11 // pred_check_branch
          %129 = sbr.rel (%p127) target = $region20
        $region19: #{tpu_custom_call.1} parent=11 // pred_region
          _
        $region20: #{tpu_custom_call.1} parent=11 // pred_fallthru
          _
      $region12: #{tpu_custom_call.1} parent=5 // pred_fallthru
        _
      %p130 = scmp.lt.s32.totalorder %s15, 2
      // Predicated region
      $region21: #{tpu_custom_call.1} parent=5 // pred_check
        %p131 = pneg %p130
      $region22: #{tpu_custom_call.1} parent=5 // pred_check_branch
        %133 = sbr.rel (%p131) target = $region24
      $region23: #{tpu_custom_call.1} parent=5 // pred_region
        // Predicated region
        $region25: #{tpu_custom_call.1} parent=23 // pred_check
          %p134 = pneg %p77
        $region26: #{tpu_custom_call.1} parent=23 // pred_check_branch
          %136 = sbr.rel (%p134) target = $region28
        $region27: #{tpu_custom_call.1} parent=23 // pred_region
          %s137 = sand.u32 %s67, 1
          %s138 = scalar_lea.sflag [#allocation3], %s137
          %s139 = sand.u32 %s67, 1
          %s140 = smul.addr %s139, 80
          %s141 = scalar_lea.vmem [#allocation2], %s140
          %s143 = ssub.s32 1280, 1280
          %144 = vsyncadd %s138, %s143
          %s145 = smul.addr %s15, 10
          %s146 = smul.addr %s145, 128
          %s147 = scalar_lea.hbm %s2, %s146
          %s148 = sshll.u32 %s141, 4
          %s149 = int_to_ptr.vmem [resolvable:$true] %s148
          %154 = dma.hbm_to_vmem [thread:$0]  %s147, 1280, %s149, %s138, 256, 256, 16
        $region28: #{tpu_custom_call.1} parent=23 // pred_fallthru
          _
      $region24: #{tpu_custom_call.1} parent=5 // pred_fallthru
        _
      %p155 = scmp.le.s32.totalorder 1, %s15
      %p156 = scmp.lt.s32.totalorder %s15, 3
      %p157 = pnand %p155, %p156
      %p158 = pneg %p157
      // Predicated region
      $region29: #{tpu_custom_call.1} parent=5 // pred_check
        _
      $region30: #{tpu_custom_call.1} parent=5 // pred_check_branch
        %160 = sbr.rel (%p157) target = $region32
      $region31: #{tpu_custom_call.1} parent=5 // pred_region
        %s161 = ssub.s32 %s15, 1
        %s162 = sand.u32 %s70, 1
        %s163 = scalar_lea.sflag [#allocation3], %s162
        %s164 = sand.u32 %s70, 1
        %s165 = smul.addr %s164, 80
        %s166 = scalar_lea.vmem [#allocation2], %s165
        // Predicated region
        $region33: #{tpu_custom_call.1} parent=31 // pred_check
          %p167 = pneg %p83
        $region34: #{tpu_custom_call.1} parent=31 // pred_check_branch
          %169 = sbr.rel (%p167) target = $region36
        $region35: #{tpu_custom_call.1} parent=31 // pred_region
          %170 = dma.done %s163, 1280
        $region36: #{tpu_custom_call.1} parent=31 // pred_fallthru
          _
        %p171 = pneg %p36
        %p172 = pneg %p33
        %p173 = pneg %p57
        %p174 = pneg %p54
        %s175 = sand.u32 %s70, 1
        %s176 = scalar_lea.sflag [#allocation3], %s175
        %s177 = sand.u32 %s70, 1
        %s178 = smul.addr %s177, 80
        %s179 = scalar_lea.vmem [#allocation2], %s178
        %p180 = pneg %p83
        %p181 = pneg %p80
        %p182 = pneg %p109
        %p183 = pneg %p106
        %s184 = sand.u32 %s96, 1
        %s185 = scalar_lea.sflag [#allocation4], %s184
        %s186 = sand.u32 %s96, 1
        %s187 = smul.addr %s186, 16
        %s188 = scalar_lea.vmem [#allocation5], %s187
        %v189 = vld [vmem:[%s166] sm:$0xff]
        %v190 = vld [vmem:[%s166 + $0x8] sm:$0xff]
        %v191 = vld [vmem:[%s166 + $0x10] sm:$0xff]
        %v192 = vld [vmem:[%s166 + $0x18] sm:$0xff]
        %v193 = vld [vmem:[%s166 + $0x20] sm:$0xff]
        %v194 = vld [vmem:[%s166 + $0x28] sm:$0xff]
        %v195 = vld [vmem:[%s166 + $0x30] sm:$0xff]
        %v196 = vld [vmem:[%s166 + $0x38] sm:$0xff]
        %v197 = vld [vmem:[%s166 + $0x40] sm:$0xff]
        %v198 = vld [vmem:[%s166 + $0x48] sm:$0xff]
        %v199 = vld [vmem:[%s0] sm:$0xff]
        %v200 = vld [vmem:[%s1] sm:$0xff]
        %202 = vset.pattern.permute.xlu0 0
        %203 = vperm.xlu0 %202, %v200
        %v204 = vpop.permute.xlu0 %203
        %vm206 = vcmask 326656
        %v208 = vsel %vm206, %v199, 0
        %210 = vmatprep.subr.mxu0 0.0
        %211 = vmatpush1.msra.mxu0 0.0
        %212 = vmatprep.subr.mxu0 0.0
        %213 = vmatpush1.msra.mxu0 0.0
        %214 = vmatprep.subr.mxu0 0.0
        %215 = vmatpush1.msra.mxu0 0.0
        %216 = vmatprep.subr.mxu0 0.0
        %217 = vmatpush1.msra.mxu0 0.0
        %218 = vmatprep.subr.mxu0 0.0
        %219 = vmatpush1.msra.mxu0 0.0
        %220 = vmatprep.subr.mxu0 0.0
        %221 = vmatpush1.msra.mxu0 0.0
        %222 = vmatprep.subr.mxu0 0.0
        %223 = vmatpush1.msra.mxu0 0.0
        %224 = vmatprep.subr.mxu0 0.0
        %225 = vmatpush1.msra.mxu0 0.0
        %226 = vmatprep.subr.mxu0 0.0
        %227 = vmatpush1.msra.mxu0 0.0
        %228 = vmatprep.subr.mxu0 0.0
        %229 = vmatpush1.msra.mxu0 0.0
        %230 = vmatprep.subr.mxu0 0.0
        %231 = vmatpush1.msra.mxu0 0.0
        %232 = vmatprep.subr.mxu0 %v198
        %233 = vmatpush1.msra.mxu0 %v197
        %234 = vmatprep.subr.mxu0 %v196
        %235 = vmatpush1.msra.mxu0 %v195
        %236 = vmatprep.subr.mxu0 %v194
        %237 = vmatpush1.msra.mxu0 %v193
        %238 = vmatprep.subr.mxu0 %v192
        %239 = vmatpush1.msra.mxu0 %v191
        %240 = vmatprep.subr.mxu0 %v190
        %241 = vmatpush1.msra.mxu0 %v189
        %242 = vmatprep.subr.mxu0 0.0
        %243 = vmatpush2.msra.mxu0 0.0
        %244 = vmatprep.subr.mxu0 0.0
        %245 = vmatpush2.msra.mxu0 0.0
        %246 = vmatprep.subr.mxu0 0.0
        %247 = vmatpush2.msra.mxu0 0.0
        %248 = vmatprep.subr.mxu0 0.0
        %249 = vmatpush2.msra.mxu0 0.0
        %250 = vmatprep.subr.mxu0 0.0
        %251 = vmatpush2.msra.mxu0 0.0
        %252 = vmatprep.subr.mxu0 0.0
        %253 = vmatpush2.msra.mxu0 0.0
        %254 = vmatprep.subr.mxu0 0.0
        %255 = vmatpush2.msra.mxu0 0.0
        %256 = vmatprep.subr.mxu0 0.0
        %257 = vmatpush2.msra.mxu0 0.0
        %258 = vmatprep.subr.mxu0 0.0
        %259 = vmatpush2.msra.mxu0 0.0
        %260 = vmatprep.subr.mxu0 0.0
        %261 = vmatpush2.msra.mxu0 0.0
        %262 = vmatprep.subr.mxu0 0.0
        %263 = vmatpush2.msra.mxu0 0.0
        %264 = vmatprep.subr.mxu0 0.0
        %265 = vmatpush2.msra.mxu0 0.0
        %266 = vmatprep.subr.mxu0 0.0
        %267 = vmatpush2.msra.mxu0 0.0
        %268 = vmatprep.subr.mxu0 0.0
        %269 = vmatpush2.msra.mxu0 0.0
        %270 = vmatprep.subr.mxu0 0.0
        %271 = vmatpush2.msra.mxu0 0.0
        %272 = vmatprep.subr.mxu0 0.0
        %273 = vmatpush2.msra.mxu0 0.0
        %274 = vmatprep.mubr.f32.mxu0 0.0
        %275 = vmatmul.mubr.f32.gmra.mxu0 %v208
        %v276 = vpop.f32.mrf.mxu0
        %v277 = vadd.f32 %v204, %v276
        %v278 = vpop.f32.mrf.mxu0
        %v279 = vadd.f32 %v204, %v278
        %280 = vdwg.mxu0
        %281 = vst [vmem:[%s188] sm:$0xff] %v277
        %282 = vst [vmem:[%s188 + $0x8] sm:$0xff] %v279
        %s283 = sand.u32 %s96, 1
        %s284 = scalar_lea.sflag [#allocation4], %s283
        %s285 = sand.u32 %s96, 1
        %s286 = smul.addr %s285, 16
        %s287 = scalar_lea.vmem [#allocation5], %s286
        // Predicated region
        $region37: #{tpu_custom_call.1} parent=31 // pred_check
          %p288 = pneg %p106
        $region38: #{tpu_custom_call.1} parent=31 // pred_check_branch
          %290 = sbr.rel (%p288) target = $region40
        $region39: #{tpu_custom_call.1} parent=31 // pred_region
          %s292 = ssub.s32 256, 256
          %293 = vsyncadd %s284, %s292
          %s294 = smul.addr %s20, 2
          %s295 = smul.addr %s294, 128
          %s296 = scalar_lea.hbm %s3, %s295
          %s298 = sshll.u32 %s287, 4
          %s299 = int_to_ptr.vmem [resolvable:$true] %s298
          %301 = dma.vmem_to_hbm [thread:$0]  %s299, 256, %s296, %s284
        $region40: #{tpu_custom_call.1} parent=31 // pred_fallthru
          _
      $region32: #{tpu_custom_call.1} parent=5 // pred_fallthru
        _
      %p302 = scmp.le.s32.totalorder 2, %s15
      // Predicated region
      $region41: #{tpu_custom_call.1} parent=5 // pred_check
        %p303 = pneg %p302
      $region42: #{tpu_custom_call.1} parent=5 // pred_check_branch
        %305 = sbr.rel (%p303) target = $region44
      $region43: #{tpu_custom_call.1} parent=5 // pred_region
        %s306 = ssub.s32 %s15, 2
        // Predicated region
        $region45: #{tpu_custom_call.1} parent=43 // pred_check
          %p307 = pneg %p112
        $region46: #{tpu_custom_call.1} parent=43 // pred_check_branch
          %309 = sbr.rel (%p307) target = $region48
        $region47: #{tpu_custom_call.1} parent=43 // pred_region
          %s310 = sand.u32 %s97, 1
          %s311 = scalar_lea.sflag [#allocation4], %s310
          %s312 = sand.u32 %s97, 1
          %s313 = smul.addr %s312, 16
          %s314 = scalar_lea.vmem [#allocation5], %s313
          %315 = dma.done %s311, 256
        $region48: #{tpu_custom_call.1} parent=43 // pred_fallthru
          _
      $region44: #{tpu_custom_call.1} parent=5 // pred_fallthru
        _
    $region6: #{tpu_custom_call.1} parent=1 // loop_footer
      %s19 = sadd.s32 1, %s15
    $region7: #{tpu_custom_call.1} parent=1 // loop_footer_branch
      %14 = sbr.rel target = $region3
    $region8: #{tpu_custom_call.1} parent=1 // loop_exit
      _
    %316 = vsyncpa [#allocation3], 1
    %s317 = scalar_lea.sflag [#allocation3], 1
    %318 = vsyncpa %s317, 1
    %319 = vsyncpa [#allocation4], 1
    %s320 = scalar_lea.sflag [#allocation4], 1
    %321 = vsyncpa %s320, 1

</llo_original>
